<compile_context>
chip_gen: v5e
topology: v5e:2x2
jax: 0.10.0
libtpu: 0.0.40
codegen_flags: <defaults>
</compile_context>

<pallas_src>
import functools
import math

import jax
import jax.numpy as jnp
from jax.experimental import pallas as pl
from jax.experimental.pallas import tpu as pltpu


def _round_up(x, m):
    return (x + m - 1) // m * m


def _vmem_budget_bytes():
    """~75% of physical VMEM (per core); conservative fallback if unknown."""
    try:
        cap = pltpu.get_tpu_info().vmem_capacity_bytes
    except Exception:
        cap = 64 * 1024 * 1024  # safe on every generation (v7x physical)
    return int(cap * 3 // 4)


def _arcface_kernel(label_ref, xn_ref, wt_ref, invw_ref, out_ref, *, s, cos_m,
                    sin_m, th, mm, easy_margin, tile_c):
    # label_ref: (TILE_B, 1) int32
    # xn_ref:    (TILE_B, D_pad) f32, rows already L2-normalized
    # wt_ref:    (D_pad, TILE_C) f32 or bf16, un-normalized weight columns
    # invw_ref:  (1, TILE_C) f32, precomputed 1/||w_c|| (batch-invariant)
    # out_ref:   (TILE_B, TILE_C) f32
    xn = xn_ref[...]
    wt = wt_ref[...]
    if wt.dtype != xn.dtype:
        # bf16 streaming knob: feed both MXU operands in the streamed dtype,
        # accumulate in f32 via preferred_element_type.
        xn = xn.astype(wt.dtype)

    # cosine = normalize(x) @ normalize(W).T ; the per-class norm is folded in
    # AFTER the matmul as one (1, TILE_C) multiply.
    cosine = jax.lax.dot_general(
        xn, wt, (((1,), (0,)), ((), ())),
        preferred_element_type=jnp.float32) * invw_ref[...]

    # Margin math. maximum(., 0) only guards against cos^2 > 1 rounding
    # (would be NaN in the unclamped PyTorch formula).
    sine = jnp.sqrt(jnp.maximum(1.0 - cosine * cosine, 0.0))
    phi = cosine * cos_m - sine * sin_m
    if easy_margin:
        phi = jnp.where(cosine > 0.0, phi, cosine)
    else:
        phi = jnp.where(cosine > th, phi, cosine - mm)

    # One-hot select: rebase the label by this class tile's column offset
    # (per-row (TILE_B,1) subtract) and compare against a plain 0..TILE_C iota.
    rel_label = label_ref[...] - pl.program_id(0) * tile_c      # (TILE_B, 1)
    col_ids = jax.lax.broadcasted_iota(jnp.int32, cosine.shape, 1)
    out = jnp.where(col_ids == rel_label, phi, cosine) * s
    out_ref[...] = out.astype(out_ref.dtype)


@functools.partial(
    jax.jit,
    static_argnames=("s", "m", "easy_margin", "tile_b_max", "tile_c_max",
                     "weight_dtype"))
def arc_margin_product(x, weight, label, *, s=30.0, m=0.5, easy_margin=False,
                       tile_b_max=128, tile_c_max=2048,
                       weight_dtype=jnp.float32):
    """x: (B, in_features), weight: (out_features, in_features),
    label: (B,) int.  Returns (B, out_features) f32."""
    B, D = x.shape
    C, D2 = weight.shape
    assert D == D2, "feature dims of x and weight must match"

    eps = 1e-12
    xf = x.astype(jnp.float32)
    wf = weight.astype(jnp.float32)

    # Hoisted, batch-tile-invariant prep (single fused pass under jit):
    #   * row-normalize x once,
    #   * per-class inverse norms once (matches normalize(): 1/max(||w||,eps)),
    #   * pre-transpose W to (D, C) so the class axis is the lane axis.
    xn = xf / jnp.maximum(jnp.sqrt(jnp.sum(xf * xf, axis=1, keepdims=True)), eps)
    inv_wnorm = jax.lax.rsqrt(
        jnp.maximum(jnp.sum(wf * wf, axis=1, keepdims=True), eps * eps)).T  # (1, C)
    wt = wf.T.astype(weight_dtype)                                          # (D, C)

    # Hardware-friendly padding (zeros: don't affect norms / matmul; sliced
    # away afterwards).
    d_pad = _round_up(D, 128)
    tile_b = min(_round_up(B, 8), max(8, tile_b_max))
    b_pad = _round_up(B, tile_b)

    # VMEM-gated class tile (double-buffered blocks + epilogue slack).
    budget = _vmem_budget_bytes()
    w_bytes = jnp.dtype(weight_dtype).itemsize
    c128 = _round_up(C, 128)

    def _vmem_need(tc):
        return (2 * w_bytes * d_pad * tc          # W^T double buffer
                + 2 * 4 * tile_b * d_pad          # xn
                + 2 * 4 * 8 * tc                  # inv norms (sublane-padded)
                + 2 * 4 * tile_b * 128            # label (lane-padded)
                + 2 * 4 * tile_b * tc             # output
                + 4 * 4 * tile_b * tc)            # epilogue temporaries slack

    tile_c = None
    for cand in (2048, 1024, 512, 256, 128):
        if cand > max(128, tile_c_max):
            continue
        cand = min(cand, c128)
        if _vmem_need(cand) <= budget:
            tile_c = cand
            break
    if tile_c is None:
        tile_c = 128
    c_pad = _round_up(C, tile_c)

    xn_p = jnp.pad(xn, ((0, b_pad - B), (0, d_pad - D)))
    wt_p = jnp.pad(wt, ((0, d_pad - D), (0, c_pad - C)))
    invw_p = jnp.pad(inv_wnorm, ((0, 0), (0, c_pad - C)))
    label_p = jnp.pad(label.reshape(B, 1).astype(jnp.int32),
                      ((0, b_pad - B), (0, 0)), constant_values=-1)

    # Class tiles outermost ("parallel" -> megacore shards classes, W split
    # across cores); batch tiles innermost ("arbitrary" -> weight block index
    # is constant across inner steps, so its DMA is not re-issued).
    grid = (c_pad // tile_c, b_pad // tile_b)

    kernel = functools.partial(
        _arcface_kernel,
        s=float(s),
        cos_m=math.cos(m),
        sin_m=math.sin(m),
        th=math.cos(math.pi - m),
        mm=math.sin(math.pi - m) * m,
        easy_margin=easy_margin,
        tile_c=tile_c,
    )

    out = pl.pallas_call(
        kernel,
        out_shape=jax.ShapeDtypeStruct((b_pad, c_pad), jnp.float32),
        grid=grid,
        in_specs=[
            pl.BlockSpec((tile_b, 1), lambda ci, bi: (bi, 0)),      # label
            pl.BlockSpec((tile_b, d_pad), lambda ci, bi: (bi, 0)),  # xn
            pl.BlockSpec((d_pad, tile_c), lambda ci, bi: (0, ci)),  # W^T
            pl.BlockSpec((1, tile_c), lambda ci, bi: (0, ci)),      # 1/||w_c||
        ],
        out_specs=pl.BlockSpec((tile_b, tile_c), lambda ci, bi: (bi, ci)),
        compiler_params=pltpu.CompilerParams(
            dimension_semantics=("parallel", "arbitrary"),
            vmem_limit_bytes=budget),
    )(label_p, xn_p, wt_p, invw_p)

    return out[:B, :C]


def _reference(x, weight, label, *, s=30.0, m=0.5, easy_margin=False):
    eps = 1e-12
    xn = x / jnp.maximum(jnp.linalg.norm(x, axis=1, keepdims=True), eps)
    wn = weight / jnp.maximum(
        jnp.linalg.norm(weight, axis=1, keepdims=True), eps)
    cosine = xn @ wn.T
    sine = jnp.sqrt(1.0 - cosine ** 2)
    phi = cosine * math.cos(m) - sine * math.sin(m)
    th = math.cos(math.pi - m)
    mm = math.sin(math.pi - m) * m
    if easy_margin:
        phi = jnp.where(cosine > 0, phi, cosine)
    else:
        phi = jnp.where(cosine > th, phi, cosine - mm)
    one_hot = jax.nn.one_hot(label, weight.shape[0], dtype=cosine.dtype)
    return (one_hot * phi + (1.0 - one_hot) * cosine) * s


if __name__ == "__main__":
    key = jax.random.PRNGKey(0)

    # --- Test 1: small aligned config. ---
    in_features, out_features, batch = 32, 128, 8
    kx, kw, kl = jax.random.split(key, 3)
    bound = math.sqrt(6.0 / (in_features + out_features))  # Xavier-uniform
    weight = jax.random.uniform(
        kw, (out_features, in_features), jnp.float32, minval=-bound, maxval=bound)
    x = jax.random.normal(kx, (batch, in_features), jnp.float32)
    label = jax.random.randint(kl, (batch,), 0, out_features, jnp.int32)

    out = arc_margin_product(x, weight, label, s=30.0, m=0.5, easy_margin=False)
    out = jax.block_until_ready(out)
    ref = _reference(x, weight, label, s=30.0, m=0.5, easy_margin=False)
    assert out.shape == (batch, out_features)
    assert jnp.allclose(out, ref, atol=1e-4, rtol=1e-4), "test1 mismatch"

    # --- Test 2: unaligned shapes + multi-tile (class outer, batch inner)
    #     grid; forces padding, rebased labels, and the easy_margin branch. ---
    in_features2, out_features2, batch2 = 96, 300, 12
    kx2, kw2, kl2 = jax.random.split(jax.random.PRNGKey(1), 3)
    bound2 = math.sqrt(6.0 / (in_features2 + out_features2))
    weight2 = jax.random.uniform(
        kw2, (out_features2, in_features2), jnp.float32,
        minval=-bound2, maxval=bound2)
    x2 = jax.random.normal(kx2, (batch2, in_features2), jnp.float32)
    label2 = jax.random.randint(kl2, (batch2,), 0, out_features2, jnp.int32)

    out2 = arc_margin_product(x2, weight2, label2, s=30.0, m=0.5,
                              easy_margin=True, tile_b_max=8, tile_c_max=128)
    out2 = jax.block_until_ready(out2)
    ref2 = _reference(x2, weight2, label2, s=30.0, m=0.5, easy_margin=True)
    assert out2.shape == (batch2, out_features2)
    assert jnp.allclose(out2, ref2, atol=1e-4, rtol=1e-4), "test2 mismatch"

    # --- Test 3: bf16 weight-streaming knob (perf path) — smoke test only,
    #     since bf16 operands trade ~1e-3 cosine accuracy for ~2x HBM/MXU. ---
    out3 = arc_margin_product(x2, weight2, label2, s=30.0, m=0.5,
                              easy_margin=True, weight_dtype=jnp.bfloat16)
    out3 = jax.block_until_ready(out3)
    assert out3.shape == (batch2, out_features2)
    assert bool(jnp.all(jnp.isfinite(out3))), "test3 non-finite output"

    print("KERNEL_OK")
</pallas_src>

<mosaic_0001>
module attributes {stable_mosaic.version = 11 : i64} {
  func.func @_arcface_kernel(%arg0: i32, %arg1: i32, %arg2: memref<8x1xi32, #tpu.memory_space<vmem>>, %arg3: memref<8x128xf32, #tpu.memory_space<vmem>>, %arg4: memref<128x128xf32, #tpu.memory_space<vmem>>, %arg5: memref<1x128xf32, #tpu.memory_space<vmem>>, %arg6: memref<8x128xf32, #tpu.memory_space<vmem>>) attributes {dimension_semantics = [#tpu.dimension_semantics<parallel>, #tpu.dimension_semantics<arbitrary>], iteration_bounds = array<i64: 1, 1>, scalar_prefetch = 0 : i64, scratch_operands = 0 : i64, tpu.core_type = #tpu.core_type<tc>, window_params = [{transform_indices = @transform_0, window_bounds = array<i64: 8, 1>}, {transform_indices = @transform_1, window_bounds = array<i64: 8, 128>}, {transform_indices = @transform_2, window_bounds = array<i64: 128, 128>}, {transform_indices = @transform_3, window_bounds = array<i64: 1, 128>}, {transform_indices = @transform_4, window_bounds = array<i64: 8, 128>}]} {
    %c0 = arith.constant 0 : index
    %c0_0 = arith.constant 0 : index
    %0 = vector.load %arg3[%c0, %c0_0] : memref<8x128xf32, #tpu.memory_space<vmem>>, vector<8x128xf32>
    %c0_1 = arith.constant 0 : index
    %c0_2 = arith.constant 0 : index
    %1 = vector.load %arg4[%c0_1, %c0_2] : memref<128x128xf32, #tpu.memory_space<vmem>>, vector<128x128xf32>
    %cst = arith.constant dense<0.000000e+00> : vector<8x128xf32>
    %2 = tpu.matmul %0, %1, %cst {dimension_numbers = #tpu.dot_dimension_numbers<[1], [0], [0], [1], [0, 0, 1, 1], [], []>} : vector<8x128xf32>, vector<128x128xf32>, vector<8x128xf32> -> vector<8x128xf32>
    %c0_3 = arith.constant 0 : index
    %c0_4 = arith.constant 0 : index
    %3 = vector.load %arg5[%c0_3, %c0_4] : memref<1x128xf32, #tpu.memory_space<vmem>>, vector<1x128xf32>
    %4 = vector.broadcast %3 : vector<1x128xf32> to vector<8x128xf32>
    %5 = arith.mulf %2, %4 : vector<8x128xf32>
    %6 = arith.mulf %5, %5 : vector<8x128xf32>
    %cst_5 = arith.constant 1.000000e+00 : f32
    %7 = vector.broadcast %cst_5 : f32 to vector<8x128xf32>
    %8 = arith.subf %7, %6 : vector<8x128xf32>
    %cst_6 = arith.constant 0.000000e+00 : f32
    %9 = vector.broadcast %cst_6 : f32 to vector<8x128xf32>
    %10 = arith.maximumf %8, %9 : vector<8x128xf32>
    %11 = math.sqrt %10 : vector<8x128xf32>
    %cst_7 = arith.constant 0.87758255 : f32
    %12 = vector.broadcast %cst_7 : f32 to vector<8x128xf32>
    %13 = arith.mulf %5, %12 : vector<8x128xf32>
    %cst_8 = arith.constant 0.47942555 : f32
    %14 = vector.broadcast %cst_8 : f32 to vector<8x128xf32>
    %15 = arith.mulf %11, %14 : vector<8x128xf32>
    %16 = arith.subf %13, %15 : vector<8x128xf32>
    %cst_9 = arith.constant -0.87758255 : f32
    %17 = vector.broadcast %cst_9 : f32 to vector<8x128xf32>
    %18 = arith.cmpf ogt, %5, %17 : vector<8x128xf32>
    %cst_10 = arith.constant 0.239712775 : f32
    %19 = vector.broadcast %cst_10 : f32 to vector<8x128xf32>
    %20 = arith.subf %5, %19 : vector<8x128xf32>
    %21 = arith.select %18, %16, %20 : vector<8x128xi1>, vector<8x128xf32>
    %c0_11 = arith.constant 0 : index
    %c0_12 = arith.constant 0 : index
    %22 = vector.load %arg2[%c0_11, %c0_12] : memref<8x1xi32, #tpu.memory_space<vmem>>, vector<8x1xi32>
    %c128_i32 = arith.constant 128 : i32
    %23 = arith.muli %arg0, %c128_i32 : i32
    %24 = vector.broadcast %23 : i32 to vector<8x1xi32>
    %25 = arith.subi %22, %24 : vector<8x1xi32>
    %26 = tpu.iota {dimensions = array<i32: 1>} : vector<8x128xi32>
    %27 = vector.broadcast %25 : vector<8x1xi32> to vector<8x128xi32>
    %28 = arith.cmpi eq, %26, %27 : vector<8x128xi32>
    %29 = arith.select %28, %21, %5 : vector<8x128xi1>, vector<8x128xf32>
    %cst_13 = arith.constant 3.000000e+01 : f32
    %30 = vector.broadcast %cst_13 : f32 to vector<8x128xf32>
    %31 = arith.mulf %29, %30 : vector<8x128xf32>
    %c0_14 = arith.constant 0 : index
    %c0_15 = arith.constant 0 : index
    %32 = vector.load %arg6[%c0_14, %c0_15] : memref<8x128xf32, #tpu.memory_space<vmem>>, vector<8x128xf32>
    tpu.vector_store %arg6[%c0_14, %c0_15], %31 {strides = array<i32>} : memref<8x128xf32, #tpu.memory_space<vmem>>, vector<8x128xf32>,
    return
  }
  func.func @transform_0(%arg0: i32, %arg1: i32) -> (i32, i32) {
    %c0_i32 = arith.constant 0 : i32
    %c0_i32_0 = arith.constant 0 : i32
    return %arg1, %c0_i32 : i32, i32
  }
  func.func @transform_1(%arg0: i32, %arg1: i32) -> (i32, i32) {
    %c0_i32 = arith.constant 0 : i32
    %c0_i32_0 = arith.constant 0 : i32
    return %arg1, %c0_i32 : i32, i32
  }
  func.func @transform_2(%arg0: i32, %arg1: i32) -> (i32, i32) {
    %c0_i32 = arith.constant 0 : i32
    %c0_i32_0 = arith.constant 0 : i32
    return %c0_i32, %arg0 : i32, i32
  }
  func.func @transform_3(%arg0: i32, %arg1: i32) -> (i32, i32) {
    %c0_i32 = arith.constant 0 : i32
    %c0_i32_0 = arith.constant 0 : i32
    return %c0_i32, %arg0 : i32, i32
  }
  func.func @transform_4(%arg0: i32, %arg1: i32) -> (i32, i32) {
    %c0_i32 = arith.constant 0 : i32
    return %arg1, %arg0 : i32, i32
  }
}

</mosaic_0001>

<llo_original>
// kernel: arc_margin_product.1
$region0: #{arc_margin_product.1}
  #allocation0 [shape = 'u32[]', space=smem, size = 0x4, offset = 0x4, fixed_abs, tag = 'smem constant byte address 0x4 - core index']
  #allocation1 [shape = 'u32[72,128]{1,0:T(1,128)}', space=vmem, size = 0x9000, scoped, tag = 'internal scratch']
  %s0 = inlined_call_operand.vmem [shape: s32[8,1], index: 0, kind: input, shape index: {}]
  %s1 = inlined_call_operand.vmem [shape: f32[8,128], index: 1, kind: input, shape index: {}]
  %s2 = inlined_call_operand.vmem [shape: f32[128,128], index: 2, kind: input, shape index: {}]
  %s3 = inlined_call_operand.vmem [shape: f32[1,128], index: 3, kind: input, shape index: {}]
  %s4 = inlined_call_operand.hbm [shape: f32[8,128], index: 4, kind: output, shape index: {}]
  %s5 = sld [smem:[#allocation0]]
  $region26: #{arc_margin_product.1} parent=0
    _
  %s7 = ssub.s32 1, %s5
  %s8 = scalar_select 0, %s7, %s5
  $region1: #{arc_margin_product.1} parent=0
    #allocation2 [shape = 'u8[4096]{0}', space=vmem, size = 0x1000, scoped, tag = 'output window, operand 0, single buffered']
    #allocation3 [shape = 's32[1]{0}', space=sflag, size = 0x4, scoped, tag = 'scoped memory for arc_margin_product.1']
    %9 = vsyncpa [#allocation3], 0
    // Predicated region
    $region2: #{arc_margin_product.1} parent=1 // pred_check
      _
    $region3: #{arc_margin_product.1} parent=1 // pred_check_branch
      %11 = sbr.rel (0) target = $region5
    $region4: #{arc_margin_product.1} parent=1 // pred_region
      _
    $region5: #{arc_margin_product.1} parent=1 // pred_fallthru
      _
    // Predicated region
    $region6: #{arc_margin_product.1} parent=1 // pred_check
      _
    $region7: #{arc_margin_product.1} parent=1 // pred_check_branch
      %13 = sbr.rel (0) target = $region9
    $region8: #{arc_margin_product.1} parent=1 // pred_region
      _
    $region9: #{arc_margin_product.1} parent=1 // pred_fallthru
      _
    // Predicated region
    $region10: #{arc_margin_product.1} parent=1 // pred_check
      _
    $region11: #{arc_margin_product.1} parent=1 // pred_check_branch
      %15 = sbr.rel (0) target = $region13
    $region12: #{arc_margin_product.1} parent=1 // pred_region
      _
    $region13: #{arc_margin_product.1} parent=1 // pred_fallthru
      _
    // Predicated region
    $region14: #{arc_margin_product.1} parent=1 // pred_check
      _
    $region15: #{arc_margin_product.1} parent=1 // pred_check_branch
      %17 = sbr.rel (0) target = $region17
    $region16: #{arc_margin_product.1} parent=1 // pred_region
      _
    $region17: #{arc_margin_product.1} parent=1 // pred_fallthru
      _
    %v18 = vld [vmem:[%s1] sm:$0xff]
    %v19 = vld [vmem:[%s2] sm:$0xff]
    %v20 = vld [vmem:[%s2 + $0x8] sm:$0xff]
    %v21 = vld [vmem:[%s2 + $0x10] sm:$0xff]
    %v22 = vld [vmem:[%s2 + $0x18] sm:$0xff]
    %v23 = vld [vmem:[%s2 + $0x20] sm:$0xff]
    %v24 = vld [vmem:[%s2 + $0x28] sm:$0xff]
    %v25 = vld [vmem:[%s2 + $0x30] sm:$0xff]
    %v26 = vld [vmem:[%s2 + $0x38] sm:$0xff]
    %v27 = vld [vmem:[%s2 + $0x40] sm:$0xff]
    %v28 = vld [vmem:[%s2 + $0x48] sm:$0xff]
    %v29 = vld [vmem:[%s2 + $0x50] sm:$0xff]
    %v30 = vld [vmem:[%s2 + $0x58] sm:$0xff]
    %v31 = vld [vmem:[%s2 + $0x60] sm:$0xff]
    %v32 = vld [vmem:[%s2 + $0x68] sm:$0xff]
    %v33 = vld [vmem:[%s2 + $0x70] sm:$0xff]
    %v34 = vld [vmem:[%s2 + $0x78] sm:$0xff]
    %35 = vmatpush.msra.mxu0 %v34
    %36 = vmatpush.msra.mxu0 %v33
    %37 = vmatpush.msra.mxu0 %v32
    %38 = vmatpush.msra.mxu0 %v31
    %39 = vmatpush.msra.mxu0 %v30
    %40 = vmatpush.msra.mxu0 %v29
    %41 = vmatpush.msra.mxu0 %v28
    %42 = vmatpush.msra.mxu0 %v27
    %43 = vmatpush.msra.mxu0 %v26
    %44 = vmatpush.msra.mxu0 %v25
    %45 = vmatpush.msra.mxu0 %v24
    %46 = vmatpush.msra.mxu0 %v23
    %47 = vmatpush.msra.mxu0 %v22
    %48 = vmatpush.msra.mxu0 %v21
    %49 = vmatpush.msra.mxu0 %v20
    %50 = vmatpush.msra.mxu0 %v19
    %51 = vmatmul.f32.gmra.mxu0 %v18
    %v52 = vpop.f32.mrf.mxu0
    %v53 = vadd.f32 0.0, %v52
    %54 = vdwg.mxu0
    %v55 = vld [vmem:[%s3] sm:$0x1]
    %v57 = vperm.slane %v55, 0
    %v59 = vmul.f32 %v53, %v57
    %v60 = vmul.f32 %v59, %v59
    %v61 = vsub.f32 1.0, %v60
    %v62 = vmax.f32 %v61, 0.0
    %v63 = vrsqrt.pop %v62
    %v64 = vmul.f32 %v63, %v62
    %v65 = vmul.f32 %v64, %v63
    %v66 = vmul.f32 0.5, %v65
    %v67 = vsub.f32 1.5, %v66
    %v68 = vmul.f32 %v63, %v67
    %v69 = vmul.f32 %v62, %v68
    %vm70 = vcmp.eq.f32.partialorder %v62, inf
    %v71 = vsel %vm70, %v62, %v69
    %vm72 = vcmp.eq.f32.partialorder %v62, 0.0
    %v73 = vand.u32 %v62, 2147483648
    %v74 = vsel %vm72, %v73, %v71
    %v75 = vmul.f32 %v59, 0.87758255
    %v76 = vmul.f32 %v74, 0.47942555
    %v77 = vsub.f32 %v75, %v76
    %vm78 = vcmp.gt.f32.partialorder %v59, -0.87758255
    %v79 = vsub.f32 %v59, 0.23971277
    %v80 = vsel %vm78, %v77, %v79
    %v81 = vld [vmem:[%s0] sm:$0xff]
    %s82 = smul.u32 0, 128
    %v83 = vstv %s82
    %v84 = vsub.s32 %v81, %v83
    %v85 = vlaneseq
    %v86 = vand.u32 %v85, 127
    %87 = vset.pattern.permute.xlu0 0
    %88 = vperm.xlu0 %87, %v84
    %v89 = vpop.permute.xlu0 %88
    %vm90 = vcmp.eq.s32.totalorder %v86, %v89
    %v91 = vsel %vm90, %v80, %v59
    %v92 = vmul.f32 %v91, 30.0
    %93 = vst [vmem:[#allocation2] sm:$0xff] %v92
    // Predicated region
    $region18: #{arc_margin_product.1} parent=1 // pred_check
      _
    $region19: #{arc_margin_product.1} parent=1 // pred_check_branch
      %95 = sbr.rel (0) target = $region21
    $region20: #{arc_margin_product.1} parent=1 // pred_region
      %97 = vsyncadd [#allocation3], 0
      %s99 = sshll.u32 [#allocation2], 4
      %s100 = int_to_ptr.vmem [resolvable:$true] %s99
      %s101 = sshll.u32 %s4, 4
      %s102 = int_to_ptr.hbm [resolvable:$true] %s101
      %104 = dma.vmem_to_hbm [thread:$0]  %s100, 128, %s102, [#allocation3]
    $region21: #{arc_margin_product.1} parent=1 // pred_fallthru
      _
    // Predicated region
    $region22: #{arc_margin_product.1} parent=1 // pred_check
      _
    $region23: #{arc_margin_product.1} parent=1 // pred_check_branch
      %106 = sbr.rel (0) target = $region25
    $region24: #{arc_margin_product.1} parent=1 // pred_region
      %108 = dma.done [#allocation3], 128
    $region25: #{arc_margin_product.1} parent=1 // pred_fallthru
      _
    %109 = vsyncpa [#allocation3], 1

</llo_original>
